<compile_context>
chip_gen: v7x
topology: tpu7x:2x2x1
jax: 0.10.0
libtpu: 0.0.40
codegen_flags: <defaults>
</compile_context>

<pallas_src>
import functools

import jax
import jax.numpy as jnp
from jax.experimental import pallas as pl
from jax.experimental.pallas import tpu as pltpu

IN_FEATURES = 128
OUT_FEATURES = 10
MAX_BLOCK_B = 512      # rows per tile; multiple of 8, ~0.5 MiB/buffer of x


def _linear_kernel(x_ref, w_ref, b_ref, o_ref):
    # One batch tile per grid step: [TB, 128] @ [128, 10] + [1, 10] -> [TB, 10].
    # MXU matmul with f32 accumulation, bias broadcast along the sublane axis.
    x = x_ref[...]                     # [TB, 128]
    w = w_ref[...]                     # [128, 10]  (resident across all tiles)
    b = b_ref[...]                     # [1, 10]
    acc = jnp.dot(x, w, preferred_element_type=jnp.float32)   # [TB, 10]
    o_ref[...] = (acc + b).astype(o_ref.dtype)


def prepare_params(weight, bias):
    """One-time parameter prep (do this at init, not per forward call).

    Args:
      weight: [10, 128] float32 (PyTorch layout: [out_features, in_features])
      bias:   [10]      float32
    Returns:
      w_t: [128, 10], b2: [1, 10]
    """
    out_f, in_f = weight.shape
    assert (out_f, in_f) == (OUT_FEATURES, IN_FEATURES)
    assert bias.shape == (out_f,)
    return weight.T, bias.reshape(1, out_f)


def _round_up(n, m):
    return ((n + m - 1) // m) * m


@functools.partial(jax.jit, static_argnames=("block_b",))
def classifier_forward(x, w_t, b2, *, block_b=MAX_BLOCK_B):
    """Pallas equivalent of nn.Linear(128, 10) forward.

    Args:
      x:   [B, 128] float32
      w_t: [128, 10] float32 (pre-transposed weight from prepare_params)
      b2:  [1, 10]   float32
      block_b: batch tile size (multiple of 8)
    Returns:
      [B, 10] float32
    """
    B, in_f = x.shape
    assert in_f == IN_FEATURES
    out_f = w_t.shape[1]

    # Pick the batch tile: small batches use a single (8-aligned) tile,
    # large batches stream at block_b rows per grid step.
    tb = min(block_b, _round_up(B, 8))
    b_pad = _round_up(B, tb)
    if b_pad != B:
        x = jnp.pad(x, ((0, b_pad - B), (0, 0)))   # zero-pad tail tile

    grid = (b_pad // tb,)

    # VMEM budget: double-buffered x tiles + output tiles + resident weight/bias
    # (+ headroom). Well under the 32 MiB scoped limit on every generation.
    vmem_bytes = 4 * (2 * tb * in_f + 2 * tb * out_f + in_f * out_f + out_f)
    vmem_limit = max(4 * 1024 * 1024, 4 * vmem_bytes)

    out = pl.pallas_call(
        _linear_kernel,
        out_shape=jax.ShapeDtypeStruct((b_pad, out_f), x.dtype),
        grid_spec=pl.GridSpec(
            grid=grid,
            in_specs=[
                pl.BlockSpec((tb, in_f), lambda i: (i, 0)),       # x tile i
                pl.BlockSpec((in_f, out_f), lambda i: (0, 0)),    # weight (resident)
                pl.BlockSpec((1, out_f), lambda i: (0, 0)),       # bias   (resident)
            ],
            out_specs=pl.BlockSpec((tb, out_f), lambda i: (i, 0)),
        ),
        compiler_params=pltpu.CompilerParams(
            dimension_semantics=("parallel",),       # megacore-shardable on v7x
            vmem_limit_bytes=int(vmem_limit),
        ),
    )(x, w_t, b2)

    if b_pad != B:
        out = out[:B]
    return out


if __name__ == "__main__":
    key = jax.random.PRNGKey(0)
    k_x, k_w, k_b, k_x2 = jax.random.split(key, 4)

    B, IN, OUT = 8, IN_FEATURES, OUT_FEATURES

    # Deterministic parameter init mimicking nn.Linear default:
    # U(-1/sqrt(in_features), 1/sqrt(in_features))
    bound = 1.0 / jnp.sqrt(jnp.float32(IN))
    weight = jax.random.uniform(k_w, (OUT, IN), jnp.float32, -bound, bound)
    bias = jax.random.uniform(k_b, (OUT,), jnp.float32, -bound, bound)

    # One-time parameter prep (hoisted out of the forward hot path).
    w_t, b2 = prepare_params(weight, bias)

    # Small batch (matches the module's typical usage; single 8-row tile).
    x = jax.random.normal(k_x, (B, IN), jnp.float32)
    out = jax.block_until_ready(classifier_forward(x, w_t, b2))
    ref = x @ weight.T + bias
    assert out.shape == (B, OUT)
    assert jnp.allclose(out, ref, atol=1e-5, rtol=1e-5)

    # Larger, non-tile-aligned batch to exercise tiling + tail padding.
    B2 = 300
    x2 = jax.random.normal(k_x2, (B2, IN), jnp.float32)
    out2 = jax.block_until_ready(classifier_forward(x2, w_t, b2, block_b=128))
    ref2 = x2 @ weight.T + bias
    assert out2.shape == (B2, OUT)
    assert jnp.allclose(out2, ref2, atol=1e-5, rtol=1e-5)

    print("KERNEL_OK")
</pallas_src>

<mosaic_0001>
module attributes {stable_mosaic.version = 11 : i64} {
  func.func @_linear_kernel(%arg0: i32, %arg1: memref<8x128xf32, #tpu.memory_space<vmem>>, %arg2: memref<128x10xf32, #tpu.memory_space<vmem>>, %arg3: memref<1x10xf32, #tpu.memory_space<vmem>>, %arg4: memref<8x10xf32, #tpu.memory_space<vmem>>) attributes {dimension_semantics = [#tpu.dimension_semantics<parallel>], iteration_bounds = array<i64: 1>, scalar_prefetch = 0 : i64, scratch_operands = 0 : i64, tpu.core_type = #tpu.core_type<tc>, window_params = [{transform_indices = @transform_0, window_bounds = array<i64: 8, 128>}, {pipeline_mode = #tpu.pipeline_mode<synchronous>, transform_indices = @transform_1, window_bounds = array<i64: 128, 10>}, {pipeline_mode = #tpu.pipeline_mode<synchronous>, transform_indices = @transform_2, window_bounds = array<i64: 1, 10>}, {transform_indices = @transform_3, window_bounds = array<i64: 8, 10>}]} {
    %c0 = arith.constant 0 : index
    %c0_0 = arith.constant 0 : index
    %0 = vector.load %arg1[%c0, %c0_0] : memref<8x128xf32, #tpu.memory_space<vmem>>, vector<8x128xf32>
    %c0_1 = arith.constant 0 : index
    %c0_2 = arith.constant 0 : index
    %1 = vector.load %arg2[%c0_1, %c0_2] : memref<128x10xf32, #tpu.memory_space<vmem>>, vector<128x10xf32>
    %c0_3 = arith.constant 0 : index
    %c0_4 = arith.constant 0 : index
    %2 = vector.load %arg3[%c0_3, %c0_4] : memref<1x10xf32, #tpu.memory_space<vmem>>, vector<1x10xf32>
    %cst = arith.constant dense<0.000000e+00> : vector<8x10xf32>
    %3 = tpu.matmul %0, %1, %cst {dimension_numbers = #tpu.dot_dimension_numbers<[1], [0], [0], [1], [0, 0, 1, 1], [], []>} : vector<8x128xf32>, vector<128x10xf32>, vector<8x10xf32> -> vector<8x10xf32>
    %4 = vector.broadcast %2 : vector<1x10xf32> to vector<8x10xf32>
    %5 = arith.addf %3, %4 : vector<8x10xf32>
    %c0_5 = arith.constant 0 : index
    %c0_6 = arith.constant 0 : index
    %6 = vector.load %arg4[%c0_5, %c0_6] : memref<8x10xf32, #tpu.memory_space<vmem>>, vector<8x10xf32>
    tpu.vector_store %arg4[%c0_5, %c0_6], %5 {strides = array<i32>} : memref<8x10xf32, #tpu.memory_space<vmem>>, vector<8x10xf32>,
    return
  }
  func.func @transform_0(%arg0: i32) -> (i32, i32) {
    %c0_i32 = arith.constant 0 : i32
    %c0_i32_0 = arith.constant 0 : i32
    return %arg0, %c0_i32 : i32, i32
  }
  func.func @transform_1(%arg0: i32) -> (i32, i32) {
    %c0_i32 = arith.constant 0 : i32
    %c0_i32_0 = arith.constant 0 : i32
    %c0_i32_1 = arith.constant 0 : i32
    return %c0_i32, %c0_i32_0 : i32, i32
  }
  func.func @transform_2(%arg0: i32) -> (i32, i32) {
    %c0_i32 = arith.constant 0 : i32
    %c0_i32_0 = arith.constant 0 : i32
    %c0_i32_1 = arith.constant 0 : i32
    return %c0_i32, %c0_i32_0 : i32, i32
  }
  func.func @transform_3(%arg0: i32) -> (i32, i32) {
    %c0_i32 = arith.constant 0 : i32
    %c0_i32_0 = arith.constant 0 : i32
    return %arg0, %c0_i32 : i32, i32
  }
}

</mosaic_0001>

<llo_original>
// kernel: classifier_forward.1
$region0: #{classifier_forward.1}
  #allocation0 [shape = 'u32[]', space=smem, size = 0x4, offset = 0x4, fixed_abs, tag = 'smem constant byte address 0x4 - core index']
  #allocation1 [shape = 'u32[144,128]{1,0:T(1,128)}', space=vmem, size = 0x12000, scoped, tag = 'internal scratch']
  %s0 = inlined_call_operand.vmem [shape: f32[8,128], index: 0, kind: input, shape index: {}]
  %s1 = inlined_call_operand.vmem [shape: f32[128,10], index: 1, kind: input, shape index: {}]
  %s2 = inlined_call_operand.vmem [shape: f32[1,10], index: 2, kind: input, shape index: {}]
  %s3 = inlined_call_operand.hbm [shape: f32[8,10], index: 3, kind: output, shape index: {}]
  %s4 = sld [smem:[#allocation0]]
  $region22: #{classifier_forward.1} parent=0
    _
  %s6 = ssub.s32 1, %s4
  %s7 = scalar_select 0, %s6, %s4
  $region1: #{classifier_forward.1} parent=0
    #allocation2 [shape = 'u8[4096]{0}', space=vmem, size = 0x1000, scoped, tag = 'output window, operand 0, single buffered']
    #allocation3 [shape = 's32[1]{0}', space=sflag, size = 0x4, scoped, tag = 'scoped memory for classifier_forward.1']
    %8 = vsyncpa [#allocation3], 0
    // Predicated region
    $region2: #{classifier_forward.1} parent=1 // pred_check
      _
    $region3: #{classifier_forward.1} parent=1 // pred_check_branch
      %10 = sbr.rel (0) target = $region5
    $region4: #{classifier_forward.1} parent=1 // pred_region
      _
    $region5: #{classifier_forward.1} parent=1 // pred_fallthru
      _
    // Predicated region
    $region6: #{classifier_forward.1} parent=1 // pred_check
      _
    $region7: #{classifier_forward.1} parent=1 // pred_check_branch
      %12 = sbr.rel (0) target = $region9
    $region8: #{classifier_forward.1} parent=1 // pred_region
      _
    $region9: #{classifier_forward.1} parent=1 // pred_fallthru
      _
    // Predicated region
    $region10: #{classifier_forward.1} parent=1 // pred_check
      _
    $region11: #{classifier_forward.1} parent=1 // pred_check_branch
      %14 = sbr.rel (0) target = $region13
    $region12: #{classifier_forward.1} parent=1 // pred_region
      _
    $region13: #{classifier_forward.1} parent=1 // pred_fallthru
      _
    %v15 = vld [vmem:[%s0] sm:$0xff]
    %v16 = vld [vmem:[%s1] sm:$0xff]
    %v17 = vld [vmem:[%s1 + $0x8] sm:$0xff]
    %v18 = vld [vmem:[%s1 + $0x10] sm:$0xff]
    %v19 = vld [vmem:[%s1 + $0x18] sm:$0xff]
    %v20 = vld [vmem:[%s1 + $0x20] sm:$0xff]
    %v21 = vld [vmem:[%s1 + $0x28] sm:$0xff]
    %v22 = vld [vmem:[%s1 + $0x30] sm:$0xff]
    %v23 = vld [vmem:[%s1 + $0x38] sm:$0xff]
    %v24 = vld [vmem:[%s1 + $0x40] sm:$0xff]
    %v25 = vld [vmem:[%s1 + $0x48] sm:$0xff]
    %v26 = vld [vmem:[%s1 + $0x50] sm:$0xff]
    %v27 = vld [vmem:[%s1 + $0x58] sm:$0xff]
    %v28 = vld [vmem:[%s1 + $0x60] sm:$0xff]
    %v29 = vld [vmem:[%s1 + $0x68] sm:$0xff]
    %v30 = vld [vmem:[%s1 + $0x70] sm:$0xff]
    %v31 = vld [vmem:[%s1 + $0x78] sm:$0xff]
    %v32 = vld [vmem:[%s2] sm:$0x1]
    %v34 = vlaneseq
    %v35 = vshrl.u32 %v34, 7
    %v36 = vsub.s32 0, %v35
    %v37 = vrot.slane %v32, %v36
    %39 = vmatprep.subr.mxu0 0.0
    %40 = vmatpush1.msra.mxu0 %v16
    %41 = vmatprep.subr.mxu0 0.0
    %42 = vmatpush1.msra.mxu0 %v17
    %43 = vmatprep.subr.mxu0 0.0
    %44 = vmatpush1.msra.mxu0 %v18
    %45 = vmatprep.subr.mxu0 0.0
    %46 = vmatpush1.msra.mxu0 %v19
    %47 = vmatprep.subr.mxu0 0.0
    %48 = vmatpush1.msra.mxu0 %v20
    %49 = vmatprep.subr.mxu0 0.0
    %50 = vmatpush1.msra.mxu0 %v21
    %51 = vmatprep.subr.mxu0 0.0
    %52 = vmatpush1.msra.mxu0 %v22
    %53 = vmatprep.subr.mxu0 0.0
    %54 = vmatpush1.msra.mxu0 %v23
    %55 = vmatprep.subr.mxu0 0.0
    %56 = vmatpush1.msra.mxu0 %v24
    %57 = vmatprep.subr.mxu0 0.0
    %58 = vmatpush1.msra.mxu0 %v25
    %59 = vmatprep.subr.mxu0 0.0
    %60 = vmatpush1.msra.mxu0 %v26
    %61 = vmatprep.subr.mxu0 0.0
    %62 = vmatpush1.msra.mxu0 %v27
    %63 = vmatprep.subr.mxu0 0.0
    %64 = vmatpush1.msra.mxu0 %v28
    %65 = vmatprep.subr.mxu0 0.0
    %66 = vmatpush1.msra.mxu0 %v29
    %67 = vmatprep.subr.mxu0 0.0
    %68 = vmatpush1.msra.mxu0 %v30
    %69 = vmatprep.subr.mxu0 0.0
    %70 = vmatpush1.msra.mxu0 %v31
    %71 = vmatprep.subr.mxu0 0.0
    %72 = vmatpush1.msra.mxu0 0.0
    %73 = vmatprep.subr.mxu0 0.0
    %74 = vmatpush1.msra.mxu0 0.0
    %75 = vmatprep.subr.mxu0 0.0
    %76 = vmatpush1.msra.mxu0 0.0
    %77 = vmatprep.subr.mxu0 0.0
    %78 = vmatpush1.msra.mxu0 0.0
    %79 = vmatprep.subr.mxu0 0.0
    %80 = vmatpush1.msra.mxu0 0.0
    %81 = vmatprep.subr.mxu0 0.0
    %82 = vmatpush1.msra.mxu0 0.0
    %83 = vmatprep.subr.mxu0 0.0
    %84 = vmatpush1.msra.mxu0 0.0
    %85 = vmatprep.subr.mxu0 0.0
    %86 = vmatpush1.msra.mxu0 0.0
    %87 = vmatprep.subr.mxu0 0.0
    %88 = vmatpush1.msra.mxu0 0.0
    %89 = vmatprep.subr.mxu0 0.0
    %90 = vmatpush1.msra.mxu0 0.0
    %91 = vmatprep.subr.mxu0 0.0
    %92 = vmatpush1.msra.mxu0 0.0
    %93 = vmatprep.subr.mxu0 0.0
    %94 = vmatpush1.msra.mxu0 0.0
    %95 = vmatprep.subr.mxu0 0.0
    %96 = vmatpush1.msra.mxu0 0.0
    %97 = vmatprep.subr.mxu0 0.0
    %98 = vmatpush1.msra.mxu0 0.0
    %99 = vmatprep.subr.mxu0 0.0
    %100 = vmatpush1.msra.mxu0 0.0
    %101 = vmatprep.subr.mxu0 0.0
    %102 = vmatpush1.msra.mxu0 0.0
    %103 = vmatprep.mubr.f32.mxu0 0.0
    %104 = vmatmul.mubr.f32.gmra.mrb[0].mxu0 %v15
    %v105 = vpop.f32.mrb[0].mxu0
    %v106 = vadd.f32 %v37, %v105
    %v107 = vpop.f32.mrb[0].mxu0
    %108 = vdwg.mxu0
    %vm109 = vcmask 80896
    %110 = vst.msk [vmem:[#allocation2] sm:$0xff] %vm109, %v106
    // Predicated region
    $region14: #{classifier_forward.1} parent=1 // pred_check
      _
    $region15: #{classifier_forward.1} parent=1 // pred_check_branch
      %112 = sbr.rel (0) target = $region17
    $region16: #{classifier_forward.1} parent=1 // pred_region
      %s114 = ssub.s32 128, 128
      %115 = vsyncadd [#allocation3], %s114
      %s117 = sshll.u32 [#allocation2], 4
      %s118 = int_to_ptr.vmem [resolvable:$true] %s117
      %120 = dma.vmem_to_hbm [thread:$0]  %s118, 128, %s3, [#allocation3]
    $region17: #{classifier_forward.1} parent=1 // pred_fallthru
      _
    // Predicated region
    $region18: #{classifier_forward.1} parent=1 // pred_check
      _
    $region19: #{classifier_forward.1} parent=1 // pred_check_branch
      %122 = sbr.rel (0) target = $region21
    $region20: #{classifier_forward.1} parent=1 // pred_region
      %123 = dma.done [#allocation3], 128
    $region21: #{classifier_forward.1} parent=1 // pred_fallthru
      _
    %124 = vsyncpa [#allocation3], 1

</llo_original>
